<compile_context>
chip_gen: v7x
topology: tpu7x:2x2x1
jax: 0.10.0
libtpu: 0.0.40
codegen_flags: <defaults>
</compile_context>

<pallas_src>
import functools

import jax
import jax.numpy as jnp
from jax.experimental import pallas as pl
from jax.experimental.pallas import tpu as pltpu


def _kappa_stats_kernel(y_pow, apply_softmax, hw_valid, tile_hw,
                        tiles_per_chunk, needs_mask, needs_sanitize,
                        logits_ref, labels_ref,
                        ha_ref, hb_ref, nom_ref, cce_ref):
    """Accumulates per-(chunk, image): rating histograms, the fused kappa
    numerator sum_{i,t} probs[i,t]*(i - label_t)^2, and the CE sum.

    Blocks: logits (1, C, T), labels (1, 1, T) with C (=num_ratings) on
    sublanes and the T spatial samples lane-dense. Outputs are tiny
    accumulators zeroed on the first HW tile and VMEM-resident across the
    trailing reduction axis.
    """
    j = pl.program_id(2)

    @pl.when(j == 0)
    def _():
        ha_ref[...] = jnp.zeros_like(ha_ref)
        hb_ref[...] = jnp.zeros_like(hb_ref)
        nom_ref[...] = jnp.zeros_like(nom_ref)
        cce_ref[...] = jnp.zeros_like(cce_ref)

    logits = logits_ref[0].astype(jnp.float32)       # (C, T) lane-dense
    labels = labels_ref[0].astype(jnp.int32)         # (1, T)
    num_c, t = logits.shape

    mask = None
    if needs_mask:
        base = (pl.program_id(0) * tiles_per_chunk + j) * tile_hw
        lane = jax.lax.broadcasted_iota(jnp.int32, (1, t), 1) + base
        mask_b = lane < hw_valid                     # (1, T) valid-sample mask
        mask = mask_b.astype(jnp.float32)
        if needs_sanitize:
            # OOB lanes of the partial last tile hold uninitialized VMEM; zero
            # them before exp so NaN/Inf garbage cannot leak through the sums.
            logits = jnp.where(mask_b, logits, 0.0)
            labels = jnp.where(mask_b, labels, 0)

    # One-hot is never materialized: a single-vreg class-id column broadcast
    # against the lane-dense labels gives the boolean selector directly.
    class_ids = jax.lax.broadcasted_iota(jnp.int32, (num_c, 1), 0)   # (C, 1)
    eq = class_ids == labels                                         # (C, T)

    # Numerically stable softmax pieces, shared with the cross entropy.
    # All class-axis reductions are cheap sublane (XLU) reduces.
    m = jnp.max(logits, axis=0, keepdims=True)        # (1, T)
    e = jnp.exp(logits - m)                           # (C, T)
    s = jnp.sum(e, axis=0, keepdims=True)             # (1, T)
    lse = m + jnp.log(s)                              # (1, T)
    picked = jnp.sum(jnp.where(eq, logits, 0.0), axis=0, keepdims=True)
    ce = lse - picked                                 # (1, T)
    if needs_mask:
        ce = ce * mask
    cce_ref[...] += jnp.sum(ce, axis=1, keepdims=True)[None, None]

    if apply_softmax:
        inv_s = pl.reciprocal(s, approx=False)        # one recip per sample
        if needs_mask:
            inv_s = inv_s * mask                      # fold mask into (1,T)
        probs = e * inv_s                             # (C, T), tail already 0
    else:
        probs = logits
        if needs_mask:
            probs = probs * mask
    # Small integer powers as repeated VPU multiplies (no exp/log on EUP).
    if isinstance(y_pow, int) and 1 < y_pow <= 8:
        p = probs
        for _ in range(y_pow - 1):
            p = p * probs
        probs = p
    elif y_pow != 1:
        probs = probs ** y_pow

    ha_ref[...] += jnp.sum(probs, axis=1, keepdims=True)[None, None]  # (C,1)

    if needs_mask:
        hb = jnp.sum(jnp.where(eq, mask, 0.0), axis=1, keepdims=True)
    else:
        hb = jnp.sum(eq.astype(jnp.float32), axis=1, keepdims=True)
    hb_ref[...] += hb[None, None]                                      # (C,1)

    # Fused kappa numerator: sum(W * conf) == sum_t sum_i probs[i,t]*(i-y_t)^2.
    # probs is already tail-masked (zero on invalid lanes), labels sanitized,
    # so no extra masking is needed here and no (C,C) matrix ever exists.
    d = (class_ids - labels).astype(jnp.float32)                       # (C,T)
    col = jnp.sum(probs * (d * d), axis=0, keepdims=True)              # (1,T)
    nom_ref[...] += jnp.sum(col, axis=1, keepdims=True)[None, None]


def kappa_loss(predictions, labels, *, y_pow=1, num_ratings=5,
               apply_softmax=True, cce_weight=0.1, kappa_weight=1.0,
               max_tile_hw=32768):
    """JAX/Pallas equivalent of KappaLossPytorch.forward.

    predictions: (N, C, H, W) logits (f32 or bf16); labels: (N, H, W) ints
    (any integer dtype; narrow dtypes such as int8 reduce label HBM traffic
    and are widened inside the kernel).
    """
    n, c, h, w = predictions.shape
    assert c == num_ratings
    assert max_tile_hw % 128 == 0
    hw = h * w
    batch = n * hw

    # Free reshapes (no HBM relayout): NCHW -> (N, C, HW); NHW -> (N, 1, HW).
    logits3 = predictions.reshape(n, c, hw)
    if not jnp.issubdtype(labels.dtype, jnp.integer):
        labels = labels.astype(jnp.int32)
    labels3 = labels.reshape(n, 1, hw)

    # Lane tile: as large as allowed, always a multiple of 128 and <= H*W
    # (or H*W itself when H*W < 128). No wrapper-side jnp.pad: the last tile
    # may be partial and is sanitized/masked inside the kernel.
    if hw < 128:
        tile_hw = hw
    else:
        tile_hw = min(max_tile_hw, (hw // 128) * 128)
    hw_tiles = pl.cdiv(hw, tile_hw)

    # Single-image calls: split the HW tiles into 2 parallel chunks so both
    # TensorCores get work on v7x (N is the other parallel axis).
    n_chunks = 2 if (n == 1 and hw_tiles >= 2) else 1
    tiles_per_chunk = pl.cdiv(hw_tiles, n_chunks)

    covered = n_chunks * tiles_per_chunk * tile_hw
    needs_mask = covered != hw            # tail padding and/or duplicated tiles
    needs_sanitize = (hw % tile_hw) != 0  # true OOB garbage in the last tile

    if n_chunks * tiles_per_chunk != hw_tiles:
        # Odd tile count split across chunks: clamp the extra grid step onto
        # the last real tile; its contribution is fully masked out in-kernel.
        def tile_index(ck, j):
            return jnp.minimum(ck * tiles_per_chunk + j, hw_tiles - 1)
    else:
        def tile_index(ck, j):
            return ck * tiles_per_chunk + j

    kernel = functools.partial(
        _kappa_stats_kernel, y_pow, apply_softmax, hw, tile_hw,
        tiles_per_chunk, needs_mask, needs_sanitize)

    ha_p, hb_p, nom_p, cce_p = pl.pallas_call(
        kernel,
        out_shape=(
            jax.ShapeDtypeStruct((n_chunks, n, c, 1), jnp.float32),  # hist_a
            jax.ShapeDtypeStruct((n_chunks, n, c, 1), jnp.float32),  # hist_b
            jax.ShapeDtypeStruct((n_chunks, n, 1, 1), jnp.float32),  # sum(W*conf)
            jax.ShapeDtypeStruct((n_chunks, n, 1, 1), jnp.float32),  # CE sum
        ),
        grid_spec=pltpu.PrefetchScalarGridSpec(
            num_scalar_prefetch=0,
            grid=(n_chunks, n, tiles_per_chunk),
            in_specs=[
                pl.BlockSpec((1, c, tile_hw),
                             lambda ck, i, j: (i, 0, tile_index(ck, j))),
                pl.BlockSpec((1, 1, tile_hw),
                             lambda ck, i, j: (i, 0, tile_index(ck, j))),
            ],
            out_specs=[
                pl.BlockSpec((1, 1, c, 1), lambda ck, i, j: (ck, i, 0, 0)),
                pl.BlockSpec((1, 1, c, 1), lambda ck, i, j: (ck, i, 0, 0)),
                pl.BlockSpec((1, 1, 1, 1), lambda ck, i, j: (ck, i, 0, 0)),
                pl.BlockSpec((1, 1, 1, 1), lambda ck, i, j: (ck, i, 0, 0)),
            ],
        ),
        compiler_params=pltpu.CompilerParams(
            dimension_semantics=("parallel", "parallel", "arbitrary"),
            vmem_limit_bytes=32 * 1024 * 1024),
    )(logits3, labels3)

    # Tiny final combination in plain JAX: sum partials + kappa weighting.
    hist_a = jnp.sum(ha_p, axis=(0, 1))[:, 0]          # (C,)
    hist_b = jnp.sum(hb_p, axis=(0, 1))[:, 0]          # (C,)
    nom = jnp.sum(nom_p)                               # == sum(W * conf)
    cce_loss = jnp.sum(cce_p) / batch

    r = jnp.arange(num_ratings, dtype=jnp.float32)
    weights = (r[None, :] - r[:, None]) ** 2           # (i - j)^2
    denom = jnp.sum(weights * (hist_a[:, None] * hist_b[None, :]) / batch)
    return cce_weight * cce_loss + kappa_weight * nom / (denom + 1e-15)


def kappa_loss_ref(predictions, labels, *, y_pow=1, num_ratings=5,
                   apply_softmax=True, cce_weight=0.1, kappa_weight=1.0):
    """Pure-JAX reference mirroring the PyTorch forward."""
    n, c, h, w = predictions.shape
    logits = jnp.transpose(predictions, (0, 2, 3, 1)).reshape(-1, c).astype(jnp.float32)
    lab = labels.reshape(-1).astype(jnp.int32)
    batch = logits.shape[0]

    lse = jax.scipy.special.logsumexp(logits, axis=1)
    cce_loss = jnp.mean(lse - logits[jnp.arange(batch), lab])

    onehot = jax.nn.one_hot(lab, num_ratings, dtype=jnp.float32)
    probs = jax.nn.softmax(logits, axis=1) if apply_softmax else logits
    pred_norm = probs ** y_pow

    hist_a = pred_norm.sum(0)
    hist_b = onehot.sum(0)
    conf = pred_norm.T @ onehot

    r = jnp.arange(num_ratings, dtype=jnp.float32)
    weights = (r[None, :] - r[:, None]) ** 2
    nom = jnp.sum(weights * conf)
    denom = jnp.sum(weights * (hist_a[:, None] @ hist_b[None, :]) / batch)
    return cce_weight * cce_loss + kappa_weight * nom / (denom + 1e-15)


if __name__ == "__main__":
    key = jax.random.PRNGKey(0)
    k1, k2, k3, k4 = jax.random.split(key, 4)

    # Test 1: standard small shapes (single full tile, no masking path).
    N, C, H, W = 2, 5, 16, 16                 # C = num_ratings = 5
    predictions = jax.random.normal(k1, (N, C, H, W), dtype=jnp.float32)
    labels = jax.random.randint(k2, (N, H, W), 0, C, dtype=jnp.int32)
    loss = jax.block_until_ready(kappa_loss(predictions, labels))
    ref = jax.block_until_ready(kappa_loss_ref(predictions, labels))
    assert jnp.isfinite(loss), "non-finite loss"
    assert jnp.allclose(loss, ref, rtol=1e-5, atol=1e-5), (loss, ref)

    # Test 2: single image with ragged H*W (169) and a 128-lane tile ->
    # exercises the partial-tile sanitize/mask path and the 2-chunk split.
    predictions2 = jax.random.normal(k3, (1, 5, 13, 13), dtype=jnp.float32)
    labels2 = jax.random.randint(k4, (1, 13, 13), 0, 5, dtype=jnp.int32)
    loss2 = jax.block_until_ready(
        kappa_loss(predictions2, labels2, y_pow=2, max_tile_hw=128))
    ref2 = jax.block_until_ready(kappa_loss_ref(predictions2, labels2, y_pow=2))
    assert jnp.isfinite(loss2), "non-finite loss (ragged)"
    assert jnp.allclose(loss2, ref2, rtol=1e-5, atol=1e-5), (loss2, ref2)

    print("KERNEL_OK")
</pallas_src>

<mosaic_0001>
module attributes {stable_mosaic.version = 11 : i64} {
  func.func @_kappa_stats_kernel(%arg0: i32, %arg1: i32, %arg2: i32, %arg3: memref<1x5x256xf32, #tpu.memory_space<vmem>>, %arg4: memref<1x1x256xi32, #tpu.memory_space<vmem>>, %arg5: memref<1x1x5x1xf32, #tpu.memory_space<vmem>>, %arg6: memref<1x1x5x1xf32, #tpu.memory_space<vmem>>, %arg7: memref<1x1x1x1xf32, #tpu.memory_space<vmem>>, %arg8: memref<1x1x1x1xf32, #tpu.memory_space<vmem>>) attributes {dimension_semantics = [#tpu.dimension_semantics<parallel>, #tpu.dimension_semantics<parallel>, #tpu.dimension_semantics<arbitrary>], iteration_bounds = array<i64: 1, 2, 1>, scalar_prefetch = 0 : i64, scratch_operands = 0 : i64, tpu.core_type = #tpu.core_type<tc>, window_params = [{transform_indices = @transform_0, window_bounds = array<i64: 1, 5, 256>}, {transform_indices = @transform_1, window_bounds = array<i64: 1, 1, 256>}, {transform_indices = @transform_2, window_bounds = array<i64: 1, 1, 5, 1>}, {transform_indices = @transform_3, window_bounds = array<i64: 1, 1, 5, 1>}, {transform_indices = @transform_4, window_bounds = array<i64: 1, 1, 1, 1>}, {transform_indices = @transform_5, window_bounds = array<i64: 1, 1, 1, 1>}]} {
    %c0_i32 = arith.constant 0 : i32
    %0 = arith.cmpi eq, %arg2, %c0_i32 : i32
    %1 = arith.extui %0 : i1 to i32
    %c0_i32_0 = arith.constant 0 : i32
    %2 = arith.cmpi ne, %1, %c0_i32_0 : i32
    scf.if %2 {
      %cst_46 = arith.constant 0.000000e+00 : f32
      %62 = vector.broadcast %cst_46 : f32 to vector<1x1x5x1xf32>
      %c0_47 = arith.constant 0 : index
      %c0_48 = arith.constant 0 : index
      %c0_49 = arith.constant 0 : index
      %c0_50 = arith.constant 0 : index
      %63 = vector.load %arg5[%c0_47, %c0_48, %c0_49, %c0_50] : memref<1x1x5x1xf32, #tpu.memory_space<vmem>>, vector<1x1x5x1xf32>
      tpu.vector_store %arg5[%c0_47, %c0_48, %c0_49, %c0_50], %62 {strides = array<i32>} : memref<1x1x5x1xf32, #tpu.memory_space<vmem>>, vector<1x1x5x1xf32>,
      %cst_51 = arith.constant 0.000000e+00 : f32
      %64 = vector.broadcast %cst_51 : f32 to vector<1x1x5x1xf32>
      %c0_52 = arith.constant 0 : index
      %c0_53 = arith.constant 0 : index
      %c0_54 = arith.constant 0 : index
      %c0_55 = arith.constant 0 : index
      %65 = vector.load %arg6[%c0_52, %c0_53, %c0_54, %c0_55] : memref<1x1x5x1xf32, #tpu.memory_space<vmem>>, vector<1x1x5x1xf32>
      tpu.vector_store %arg6[%c0_52, %c0_53, %c0_54, %c0_55], %64 {strides = array<i32>} : memref<1x1x5x1xf32, #tpu.memory_space<vmem>>, vector<1x1x5x1xf32>,
      %cst_56 = arith.constant 0.000000e+00 : f32
      %66 = vector.broadcast %cst_56 : f32 to vector<1x1x1x1xf32>
      %c0_57 = arith.constant 0 : index
      %c0_58 = arith.constant 0 : index
      %c0_59 = arith.constant 0 : index
      %c0_60 = arith.constant 0 : index
      %67 = vector.load %arg7[%c0_57, %c0_58, %c0_59, %c0_60] : memref<1x1x1x1xf32, #tpu.memory_space<vmem>>, vector<1x1x1x1xf32>
      tpu.vector_store %arg7[%c0_57, %c0_58, %c0_59, %c0_60], %66 {strides = array<i32>} : memref<1x1x1x1xf32, #tpu.memory_space<vmem>>, vector<1x1x1x1xf32>,
      %cst_61 = arith.constant 0.000000e+00 : f32
      %68 = vector.broadcast %cst_61 : f32 to vector<1x1x1x1xf32>
      %c0_62 = arith.constant 0 : index
      %c0_63 = arith.constant 0 : index
      %c0_64 = arith.constant 0 : index
      %c0_65 = arith.constant 0 : index
      %69 = vector.load %arg8[%c0_62, %c0_63, %c0_64, %c0_65] : memref<1x1x1x1xf32, #tpu.memory_space<vmem>>, vector<1x1x1x1xf32>
      tpu.vector_store %arg8[%c0_62, %c0_63, %c0_64, %c0_65], %68 {strides = array<i32>} : memref<1x1x1x1xf32, #tpu.memory_space<vmem>>, vector<1x1x1x1xf32>,
    } else {
    }
    %c0 = arith.constant 0 : index
    %c0_1 = arith.constant 0 : index
    %c0_2 = arith.constant 0 : index
    %3 = vector.load %arg3[%c0, %c0_1, %c0_2] : memref<1x5x256xf32, #tpu.memory_space<vmem>>, vector<1x5x256xf32>
    %4 = vector.shape_cast %3 : vector<1x5x256xf32> to vector<5x256xf32>
    %c0_3 = arith.constant 0 : index
    %c0_4 = arith.constant 0 : index
    %c0_5 = arith.constant 0 : index
    %5 = vector.load %arg4[%c0_3, %c0_4, %c0_5] : memref<1x1x256xi32, #tpu.memory_space<vmem>>, vector<1x1x256xi32>
    %6 = vector.shape_cast %5 : vector<1x1x256xi32> to vector<1x256xi32>
    %7 = tpu.iota {dimensions = array<i32: 0>} : vector<5x1xi32>
    %8 = vector.broadcast %7 : vector<5x1xi32> to vector<5x256xi32>
    %9 = vector.broadcast %6 : vector<1x256xi32> to vector<5x256xi32>
    %10 = arith.cmpi eq, %8, %9 : vector<5x256xi32>
    %cst = arith.constant dense<0xFF800000> : vector<256xf32>
    %11 = vector.multi_reduction <maximumf>, %4, %cst [0] : vector<5x256xf32> to vector<256xf32>
    %12 = vector.shape_cast %11 : vector<256xf32> to vector<1x256xf32>
    %13 = vector.broadcast %12 : vector<1x256xf32> to vector<5x256xf32>
    %14 = arith.subf %4, %13 : vector<5x256xf32>
    %15 = math.exp %14 : vector<5x256xf32>
    %cst_6 = arith.constant dense<0.000000e+00> : vector<256xf32>
    %16 = vector.multi_reduction <add>, %15, %cst_6 [0] : vector<5x256xf32> to vector<256xf32>
    %17 = vector.shape_cast %16 : vector<256xf32> to vector<1x256xf32>
    %18 = math.log %17 : vector<1x256xf32>
    %19 = arith.addf %12, %18 : vector<1x256xf32>
    %cst_7 = arith.constant 0.000000e+00 : f32
    %20 = vector.broadcast %cst_7 : f32 to vector<5x256xf32>
    %21 = arith.select %10, %4, %20 : vector<5x256xi1>, vector<5x256xf32>
    %cst_8 = arith.constant dense<0.000000e+00> : vector<256xf32>
    %22 = vector.multi_reduction <add>, %21, %cst_8 [0] : vector<5x256xf32> to vector<256xf32>
    %23 = vector.shape_cast %22 : vector<256xf32> to vector<1x256xf32>
    %24 = arith.subf %19, %23 : vector<1x256xf32>
    %c0_9 = arith.constant 0 : index
    %c0_10 = arith.constant 0 : index
    %c0_11 = arith.constant 0 : index
    %c0_12 = arith.constant 0 : index
    %25 = vector.load %arg8[%c0_9, %c0_10, %c0_11, %c0_12] : memref<1x1x1x1xf32, #tpu.memory_space<vmem>>, vector<1x1x1x1xf32>
    %cst_13 = arith.constant dense<0.000000e+00> : vector<1xf32>
    %26 = vector.multi_reduction <add>, %24, %cst_13 [1] : vector<1x256xf32> to vector<1xf32>
    %27 = vector.shape_cast %26 : vector<1xf32> to vector<1x1xf32>
    %28 = vector.shape_cast %27 : vector<1x1xf32> to vector<1x1x1x1xf32>
    %29 = arith.addf %25, %28 : vector<1x1x1x1xf32>
    %c0_14 = arith.constant 0 : index
    %c0_15 = arith.constant 0 : index
    %c0_16 = arith.constant 0 : index
    %c0_17 = arith.constant 0 : index
    %30 = vector.load %arg8[%c0_14, %c0_15, %c0_16, %c0_17] : memref<1x1x1x1xf32, #tpu.memory_space<vmem>>, vector<1x1x1x1xf32>
    tpu.vector_store %arg8[%c0_14, %c0_15, %c0_16, %c0_17], %29 {strides = array<i32>} : memref<1x1x1x1xf32, #tpu.memory_space<vmem>>, vector<1x1x1x1xf32>,
    %31 = tpu.reciprocal %17 : vector<1x256xf32> -> vector<1x256xf32>
    %32 = vector.broadcast %31 : vector<1x256xf32> to vector<5x256xf32>
    %33 = arith.mulf %15, %32 : vector<5x256xf32>
    %c0_18 = arith.constant 0 : index
    %c0_19 = arith.constant 0 : index
    %c0_20 = arith.constant 0 : index
    %c0_21 = arith.constant 0 : index
    %34 = vector.load %arg5[%c0_18, %c0_19, %c0_20, %c0_21] : memref<1x1x5x1xf32, #tpu.memory_space<vmem>>, vector<1x1x5x1xf32>
    %cst_22 = arith.constant dense<0.000000e+00> : vector<5xf32>
    %35 = vector.multi_reduction <add>, %33, %cst_22 [1] : vector<5x256xf32> to vector<5xf32>
    %36 = vector.shape_cast %35 : vector<5xf32> to vector<5x1xf32>
    %37 = vector.shape_cast %36 : vector<5x1xf32> to vector<1x1x5x1xf32>
    %38 = arith.addf %34, %37 : vector<1x1x5x1xf32>
    %c0_23 = arith.constant 0 : index
    %c0_24 = arith.constant 0 : index
    %c0_25 = arith.constant 0 : index
    %c0_26 = arith.constant 0 : index
    %39 = vector.load %arg5[%c0_23, %c0_24, %c0_25, %c0_26] : memref<1x1x5x1xf32, #tpu.memory_space<vmem>>, vector<1x1x5x1xf32>
    tpu.vector_store %arg5[%c0_23, %c0_24, %c0_25, %c0_26], %38 {strides = array<i32>} : memref<1x1x5x1xf32, #tpu.memory_space<vmem>>, vector<1x1x5x1xf32>,
    %40 = arith.extui %10 : vector<5x256xi1> to vector<5x256xi32>
    %41 = arith.sitofp %40 : vector<5x256xi32> to vector<5x256xf32>
    %cst_27 = arith.constant dense<0.000000e+00> : vector<5xf32>
    %42 = vector.multi_reduction <add>, %41, %cst_27 [1] : vector<5x256xf32> to vector<5xf32>
    %43 = vector.shape_cast %42 : vector<5xf32> to vector<5x1xf32>
    %c0_28 = arith.constant 0 : index
    %c0_29 = arith.constant 0 : index
    %c0_30 = arith.constant 0 : index
    %c0_31 = arith.constant 0 : index
    %44 = vector.load %arg6[%c0_28, %c0_29, %c0_30, %c0_31] : memref<1x1x5x1xf32, #tpu.memory_space<vmem>>, vector<1x1x5x1xf32>
    %45 = vector.shape_cast %43 : vector<5x1xf32> to vector<1x1x5x1xf32>
    %46 = arith.addf %44, %45 : vector<1x1x5x1xf32>
    %c0_32 = arith.constant 0 : index
    %c0_33 = arith.constant 0 : index
    %c0_34 = arith.constant 0 : index
    %c0_35 = arith.constant 0 : index
    %47 = vector.load %arg6[%c0_32, %c0_33, %c0_34, %c0_35] : memref<1x1x5x1xf32, #tpu.memory_space<vmem>>, vector<1x1x5x1xf32>
    tpu.vector_store %arg6[%c0_32, %c0_33, %c0_34, %c0_35], %46 {strides = array<i32>} : memref<1x1x5x1xf32, #tpu.memory_space<vmem>>, vector<1x1x5x1xf32>,
    %48 = vector.broadcast %7 : vector<5x1xi32> to vector<5x256xi32>
    %49 = vector.broadcast %6 : vector<1x256xi32> to vector<5x256xi32>
    %50 = arith.subi %48, %49 : vector<5x256xi32>
    %51 = arith.sitofp %50 : vector<5x256xi32> to vector<5x256xf32>
    %52 = arith.mulf %51, %51 : vector<5x256xf32>
    %53 = arith.mulf %33, %52 : vector<5x256xf32>
    %cst_36 = arith.constant dense<0.000000e+00> : vector<256xf32>
    %54 = vector.multi_reduction <add>, %53, %cst_36 [0] : vector<5x256xf32> to vector<256xf32>
    %55 = vector.shape_cast %54 : vector<256xf32> to vector<1x256xf32>
    %c0_37 = arith.constant 0 : index
    %c0_38 = arith.constant 0 : index
    %c0_39 = arith.constant 0 : index
    %c0_40 = arith.constant 0 : index
    %56 = vector.load %arg7[%c0_37, %c0_38, %c0_39, %c0_40] : memref<1x1x1x1xf32, #tpu.memory_space<vmem>>, vector<1x1x1x1xf32>
    %cst_41 = arith.constant dense<0.000000e+00> : vector<1xf32>
    %57 = vector.multi_reduction <add>, %55, %cst_41 [1] : vector<1x256xf32> to vector<1xf32>
    %58 = vector.shape_cast %57 : vector<1xf32> to vector<1x1xf32>
    %59 = vector.shape_cast %58 : vector<1x1xf32> to vector<1x1x1x1xf32>
    %60 = arith.addf %56, %59 : vector<1x1x1x1xf32>
    %c0_42 = arith.constant 0 : index
    %c0_43 = arith.constant 0 : index
    %c0_44 = arith.constant 0 : index
    %c0_45 = arith.constant 0 : index
    %61 = vector.load %arg7[%c0_42, %c0_43, %c0_44, %c0_45] : memref<1x1x1x1xf32, #tpu.memory_space<vmem>>, vector<1x1x1x1xf32>
    tpu.vector_store %arg7[%c0_42, %c0_43, %c0_44, %c0_45], %60 {strides = array<i32>} : memref<1x1x1x1xf32, #tpu.memory_space<vmem>>, vector<1x1x1x1xf32>,
    return
  }
  func.func @transform_0(%arg0: i32, %arg1: i32, %arg2: i32) -> (i32, i32, i32) {
    %c1_i32 = arith.constant 1 : i32
    %0 = arith.muli %arg0, %c1_i32 : i32
    %1 = arith.addi %0, %arg2 : i32
    %c0_i32 = arith.constant 0 : i32
    %c0_i32_0 = arith.constant 0 : i32
    return %arg1, %c0_i32, %1 : i32, i32, i32
  }
  func.func @transform_1(%arg0: i32, %arg1: i32, %arg2: i32) -> (i32, i32, i32) {
    %c1_i32 = arith.constant 1 : i32
    %0 = arith.muli %arg0, %c1_i32 : i32
    %1 = arith.addi %0, %arg2 : i32
    %c0_i32 = arith.constant 0 : i32
    %c0_i32_0 = arith.constant 0 : i32
    return %arg1, %c0_i32, %1 : i32, i32, i32
  }
  func.func @transform_2(%arg0: i32, %arg1: i32, %arg2: i32) -> (i32, i32, i32, i32) {
    %c0_i32 = arith.constant 0 : i32
    %c0_i32_0 = arith.constant 0 : i32
    %c0_i32_1 = arith.constant 0 : i32
    return %arg0, %arg1, %c0_i32, %c0_i32_0 : i32, i32, i32, i32
  }
  func.func @transform_3(%arg0: i32, %arg1: i32, %arg2: i32) -> (i32, i32, i32, i32) {
    %c0_i32 = arith.constant 0 : i32
    %c0_i32_0 = arith.constant 0 : i32
    %c0_i32_1 = arith.constant 0 : i32
    return %arg0, %arg1, %c0_i32, %c0_i32_0 : i32, i32, i32, i32
  }
  func.func @transform_4(%arg0: i32, %arg1: i32, %arg2: i32) -> (i32, i32, i32, i32) {
    %c0_i32 = arith.constant 0 : i32
    %c0_i32_0 = arith.constant 0 : i32
    %c0_i32_1 = arith.constant 0 : i32
    return %arg0, %arg1, %c0_i32, %c0_i32_0 : i32, i32, i32, i32
  }
  func.func @transform_5(%arg0: i32, %arg1: i32, %arg2: i32) -> (i32, i32, i32, i32) {
    %c0_i32 = arith.constant 0 : i32
    %c0_i32_0 = arith.constant 0 : i32
    %c0_i32_1 = arith.constant 0 : i32
    return %arg0, %arg1, %c0_i32, %c0_i32_0 : i32, i32, i32, i32
  }
}

</mosaic_0001>

<llo_original>
// kernel: tpu_custom_call.1
$region0: #{tpu_custom_call.1}
  #allocation0 [shape = 'u32[]', space=smem, size = 0x4, offset = 0x4, fixed_abs, tag = 'smem constant byte address 0x4 - core index']
  #allocation1 [shape = 'u32[144,128]{1,0:T(1,128)}', space=vmem, size = 0x12000, scoped, tag = 'internal scratch']
  %s0 = inlined_call_operand.vmem [shape: f32[2,5,256], index: 0, kind: input, shape index: {}]
  %s1 = inlined_call_operand.vmem [shape: s32[2,1,256], index: 1, kind: input, shape index: {}]
  %s2 = inlined_call_operand.vmem [shape: f32[1,2,5,1], index: 2, kind: output, shape index: {0}]
  %s3 = inlined_call_operand.vmem [shape: f32[1,2,5,1], index: 3, kind: output, shape index: {1}]
  %s4 = inlined_call_operand.vmem [shape: f32[1,2,1,1], index: 4, kind: output, shape index: {2}]
  %s5 = inlined_call_operand.vmem [shape: f32[1,2,1,1], index: 5, kind: output, shape index: {3}]
  %6 = xla_tuple %s2, %s3, %s4, %s5
  %s7 = sld [smem:[#allocation0]]
  $region69: #{tpu_custom_call.1} parent=0
    _
  %s9 = ssub.s32 1, %s7
  %s10 = scalar_select 0, %s9, %s7
  loop: start=0, step=1, limit=4
  $region2: #{tpu_custom_call.1} parent=0 // loop_pre_header
    _
  $region3: #{tpu_custom_call.1} parent=0 // loop_header
    %s12 = sphi 0, %s16
    %p13 = scmp.ge.s32.totalorder %s12, 4
    %s19 = sphi 0, %s38
    %s20 = sphi 0, %s34
    %s21 = sphi 0, %s30
    %s22 = sphi 0, %s19
    %s23 = sphi 0, %s20
    %s24 = sphi 0, %s21
    %s25 = sphi 0, %s22
    %s26 = sphi 0, %s23
    %s27 = sphi 0, %s24
    %s45 = sphi 0, %s47
    %s48 = sphi 0, %s45
    %s49 = sphi 0, %s48
    %s65 = sphi 0, %s49
    %s75 = sphi 0, %s77
    %s78 = sphi 0, %s75
    %s79 = sphi 0, %s78
    %s95 = sphi 0, %s79
    %s103 = sphi 0, %s105
    %s106 = sphi 0, %s103
    %s107 = sphi 0, %s106
    %s123 = sphi 0, %s107
    %s131 = sphi 0, %s133
    %s134 = sphi 0, %s131
    %s135 = sphi 0, %s134
    %s151 = sphi 0, %s135
    %s159 = sphi 0, %s161
    %s162 = sphi 0, %s159
    %s163 = sphi 0, %s162
    %s179 = sphi 0, %s163
    %s187 = sphi 0, %s189
    %s190 = sphi 0, %s187
    %s191 = sphi 0, %s190
    %s207 = sphi 0, %s191
  $region4: #{tpu_custom_call.1} parent=0 // loop_header_branch
    %15 = sbr.rel (%p13) target = $region8
  $region5: #{tpu_custom_call.1} parent=0 // loop_body
    %s17 = ssub.s32 %s12, 1
    %s18 = ssub.s32 %s12, 2
    %s28 = sadd.s32 1, %s21
    %p29 = scmp.ge.s32.totalorder %s28, 1
    %s30 = scalar_select %p29, 0, %s28
    %s31 = sadd.s32 1, %s20
    %s32 = scalar_select %p29, %s31, %s20
    %p33 = scmp.ge.s32.totalorder %s32, 2
    %s34 = scalar_select %p33, 0, %s32
    %s35 = sadd.s32 1, %s19
    %s36 = scalar_select %p33, %s35, %s19
    %p37 = scmp.ge.s32.totalorder %s36, 1
    %s38 = scalar_select %p37, 0, %s36
    %s39 = sadd.s32 %s19, %s21
    %s40 = sadd.s32 %s38, %s30
    %s41 = ssub.s32 %s20, %s34
    %s42 = ssub.s32 %s39, %s40
    %s43 = sor.u32 %s41, %s42
    %p44 = scmp.eq.s32.totalorder %s43, 0
    %s46 = sadd.s32 %s45, 1
    %s47 = scalar_select %p44, %s45, %s46
    %p50 = pneg %p44
    %p51 = scmp.eq.s32.totalorder %s12, 1
    %p52 = por %p50, %p51
    %p53 = scmp.ne.s32.totalorder %s45, %s48
    %p54 = scmp.eq.s32.totalorder %s12, 0
    %p55 = por %p53, %p54
    %p56 = scmp.ne.s32.totalorder %s45, %s48
    %p57 = scmp.eq.s32.totalorder %s17, 1
    %p58 = por %p56, %p57
    %p59 = scmp.ne.s32.totalorder %s48, %s49
    %p60 = scmp.eq.s32.totalorder %s17, 0
    %p61 = por %p59, %p60
    %p62 = scmp.ne.s32.totalorder %s48, %s49
    %p63 = scmp.eq.s32.totalorder %s18, 1
    %p64 = por %p62, %p63
    %p66 = scmp.ne.s32.totalorder %s49, %s65
    %p67 = scmp.eq.s32.totalorder %s18, 0
    %p68 = por %p66, %p67
    %s69 = sadd.s32 %s19, %s21
    %s70 = sadd.s32 %s38, %s30
    %s71 = ssub.s32 %s20, %s34
    %s72 = ssub.s32 %s69, %s70
    %s73 = sor.u32 %s71, %s72
    %p74 = scmp.eq.s32.totalorder %s73, 0
    %s76 = sadd.s32 %s75, 1
    %s77 = scalar_select %p74, %s75, %s76
    %p80 = pneg %p74
    %p81 = scmp.eq.s32.totalorder %s12, 1
    %p82 = por %p80, %p81
    %p83 = scmp.ne.s32.totalorder %s75, %s78
    %p84 = scmp.eq.s32.totalorder %s12, 0
    %p85 = por %p83, %p84
    %p86 = scmp.ne.s32.totalorder %s75, %s78
    %p87 = scmp.eq.s32.totalorder %s17, 1
    %p88 = por %p86, %p87
    %p89 = scmp.ne.s32.totalorder %s78, %s79
    %p90 = scmp.eq.s32.totalorder %s17, 0
    %p91 = por %p89, %p90
    %p92 = scmp.ne.s32.totalorder %s78, %s79
    %p93 = scmp.eq.s32.totalorder %s18, 1
    %p94 = por %p92, %p93
    %p96 = scmp.ne.s32.totalorder %s79, %s95
    %p97 = scmp.eq.s32.totalorder %s18, 0
    %p98 = por %p96, %p97
    %s99 = ssub.s32 %s19, %s38
    %s100 = ssub.s32 %s20, %s34
    %s101 = sor.u32 %s99, %s100
    %p102 = scmp.eq.s32.totalorder %s101, 0
    %s104 = sadd.s32 %s103, 1
    %s105 = scalar_select %p102, %s103, %s104
    %p108 = pneg %p102
    %p109 = scmp.eq.s32.totalorder %s12, 1
    %p110 = por %p108, %p109
    %p111 = scmp.ne.s32.totalorder %s103, %s106
    %p112 = scmp.eq.s32.totalorder %s12, 0
    %p113 = por %p111, %p112
    %p114 = scmp.ne.s32.totalorder %s103, %s106
    %p115 = scmp.eq.s32.totalorder %s17, 1
    %p116 = por %p114, %p115
    %p117 = scmp.ne.s32.totalorder %s106, %s107
    %p118 = scmp.eq.s32.totalorder %s17, 0
    %p119 = por %p117, %p118
    %p120 = scmp.ne.s32.totalorder %s106, %s107
    %p121 = scmp.eq.s32.totalorder %s18, 1
    %p122 = por %p120, %p121
    %p124 = scmp.ne.s32.totalorder %s107, %s123
    %p125 = scmp.eq.s32.totalorder %s18, 0
    %p126 = por %p124, %p125
    %s127 = ssub.s32 %s19, %s38
    %s128 = ssub.s32 %s20, %s34
    %s129 = sor.u32 %s127, %s128
    %p130 = scmp.eq.s32.totalorder %s129, 0
    %s132 = sadd.s32 %s131, 1
    %s133 = scalar_select %p130, %s131, %s132
    %p136 = pneg %p130
    %p137 = scmp.eq.s32.totalorder %s12, 1
    %p138 = por %p136, %p137
    %p139 = scmp.ne.s32.totalorder %s131, %s134
    %p140 = scmp.eq.s32.totalorder %s12, 0
    %p141 = por %p139, %p140
    %p142 = scmp.ne.s32.totalorder %s131, %s134
    %p143 = scmp.eq.s32.totalorder %s17, 1
    %p144 = por %p142, %p143
    %p145 = scmp.ne.s32.totalorder %s134, %s135
    %p146 = scmp.eq.s32.totalorder %s17, 0
    %p147 = por %p145, %p146
    %p148 = scmp.ne.s32.totalorder %s134, %s135
    %p149 = scmp.eq.s32.totalorder %s18, 1
    %p150 = por %p148, %p149
    %p152 = scmp.ne.s32.totalorder %s135, %s151
    %p153 = scmp.eq.s32.totalorder %s18, 0
    %p154 = por %p152, %p153
    %s155 = ssub.s32 %s19, %s38
    %s156 = ssub.s32 %s20, %s34
    %s157 = sor.u32 %s155, %s156
    %p158 = scmp.eq.s32.totalorder %s157, 0
    %s160 = sadd.s32 %s159, 1
    %s161 = scalar_select %p158, %s159, %s160
    %p164 = pneg %p158
    %p165 = scmp.eq.s32.totalorder %s12, 1
    %p166 = por %p164, %p165
    %p167 = scmp.ne.s32.totalorder %s159, %s162
    %p168 = scmp.eq.s32.totalorder %s12, 0
    %p169 = por %p167, %p168
    %p170 = scmp.ne.s32.totalorder %s159, %s162
    %p171 = scmp.eq.s32.totalorder %s17, 1
    %p172 = por %p170, %p171
    %p173 = scmp.ne.s32.totalorder %s162, %s163
    %p174 = scmp.eq.s32.totalorder %s17, 0
    %p175 = por %p173, %p174
    %p176 = scmp.ne.s32.totalorder %s162, %s163
    %p177 = scmp.eq.s32.totalorder %s18, 1
    %p178 = por %p176, %p177
    %p180 = scmp.ne.s32.totalorder %s163, %s179
    %p181 = scmp.eq.s32.totalorder %s18, 0
    %p182 = por %p180, %p181
    %s183 = ssub.s32 %s19, %s38
    %s184 = ssub.s32 %s20, %s34
    %s185 = sor.u32 %s183, %s184
    %p186 = scmp.eq.s32.totalorder %s185, 0
    %s188 = sadd.s32 %s187, 1
    %s189 = scalar_select %p186, %s187, %s188
    %p192 = pneg %p186
    %p193 = scmp.eq.s32.totalorder %s12, 1
    %p194 = por %p192, %p193
    %p195 = scmp.ne.s32.totalorder %s187, %s190
    %p196 = scmp.eq.s32.totalorder %s12, 0
    %p197 = por %p195, %p196
    %p198 = scmp.ne.s32.totalorder %s187, %s190
    %p199 = scmp.eq.s32.totalorder %s17, 1
    %p200 = por %p198, %p199
    %p201 = scmp.ne.s32.totalorder %s190, %s191
    %p202 = scmp.eq.s32.totalorder %s17, 0
    %p203 = por %p201, %p202
    %p204 = scmp.ne.s32.totalorder %s190, %s191
    %p205 = scmp.eq.s32.totalorder %s18, 1
    %p206 = por %p204, %p205
    %p208 = scmp.ne.s32.totalorder %s191, %s207
    %p209 = scmp.eq.s32.totalorder %s18, 0
    %p210 = por %p208, %p209
    %p211 = scmp.le.s32.totalorder 1, %s12
    %p212 = scmp.lt.s32.totalorder %s12, 3
    %p213 = pnand %p211, %p212
    %p214 = pneg %p213
    // Predicated region
    $region9: #{tpu_custom_call.1} parent=5 // pred_check
      _
    $region10: #{tpu_custom_call.1} parent=5 // pred_check_branch
      %216 = sbr.rel (%p213) target = $region12
    $region11: #{tpu_custom_call.1} parent=5 // pred_region
      %s217 = ssub.s32 %s12, 1
    $region12: #{tpu_custom_call.1} parent=5 // pred_fallthru
      _
    %p218 = scmp.lt.s32.totalorder %s12, 2
    // Predicated region
    $region13: #{tpu_custom_call.1} parent=5 // pred_check
      %p219 = pneg %p218
    $region14: #{tpu_custom_call.1} parent=5 // pred_check_branch
      %221 = sbr.rel (%p219) target = $region16
    $region15: #{tpu_custom_call.1} parent=5 // pred_region
      // Predicated region
      $region17: #{tpu_custom_call.1} parent=15 // pred_check
        %p222 = pneg %p55
      $region18: #{tpu_custom_call.1} parent=15 // pred_check_branch
        %224 = sbr.rel (%p222) target = $region20
      $region19: #{tpu_custom_call.1} parent=15 // pred_region
        %s225 = sadd.s32 %s19, %s21
        %s226 = smul.u32 2, %s225
        %p227 = scmp.lt.s32.totalorder %s20, 1
        %s228 = scalar_select %p227, %s20, 1
        %p229 = scmp.lt.s32.totalorder %s226, 1
        %s230 = scalar_select %p229, %s226, 1
        %s231 = smul.addr %s228, 2
        %s232 = sadd.s32 %s230, %s231
        %s233 = smul.addr %s232, 8
        %s234 = scalar_lea.vmem %s0, %s233
        %s235 = sadd.s32 %s19, %s21
        %s236 = smul.u32 2, %s235
      $region20: #{tpu_custom_call.1} parent=15 // pred_fallthru
        _
      // Predicated region
      $region21: #{tpu_custom_call.1} parent=15 // pred_check
        %p237 = pneg %p85
      $region22: #{tpu_custom_call.1} parent=15 // pred_check_branch
        %239 = sbr.rel (%p237) target = $region24
      $region23: #{tpu_custom_call.1} parent=15 // pred_region
        %s240 = sadd.s32 %s19, %s21
        %s241 = smul.u32 2, %s240
        %p242 = scmp.lt.s32.totalorder %s20, 1
        %s243 = scalar_select %p242, %s20, 1
        %p244 = scmp.lt.s32.totalorder %s241, 1
        %s245 = scalar_select %p244, %s241, 1
        %s246 = smul.addr %s243, 2
        %s247 = sadd.s32 %s245, %s246
        %s248 = scalar_lea.vmem %s1, %s247
        %s249 = sadd.s32 %s19, %s21
        %s250 = smul.u32 2, %s249
      $region24: #{tpu_custom_call.1} parent=15 // pred_fallthru
        _
    $region16: #{tpu_custom_call.1} parent=5 // pred_fallthru
      _
    %p251 = scmp.le.s32.totalorder 1, %s12
    %p252 = scmp.lt.s32.totalorder %s12, 3
    %p253 = pnand %p251, %p252
    %p254 = pneg %p253
    // Predicated region
    $region25: #{tpu_custom_call.1} parent=5 // pred_check
      _
    $region26: #{tpu_custom_call.1} parent=5 // pred_check_branch
      %256 = sbr.rel (%p253) target = $region28
    $region27: #{tpu_custom_call.1} parent=5 // pred_region
      %s257 = ssub.s32 %s12, 1
      %s258 = sadd.s32 %s22, %s24
      %s259 = smul.u32 2, %s258
      %p260 = scmp.lt.s32.totalorder %s23, 1
      %s261 = scalar_select %p260, %s23, 1
      %p262 = scmp.lt.s32.totalorder %s259, 1
      %s263 = scalar_select %p262, %s259, 1
      %s264 = smul.addr %s261, 2
      %s265 = sadd.s32 %s263, %s264
      %s266 = smul.addr %s265, 8
      %s267 = scalar_lea.vmem %s0, %s266
      %p268 = pneg %p61
      %p269 = pneg %p58
      %s270 = sadd.s32 %s22, %s24
      %s271 = smul.u32 2, %s270
      %p272 = scmp.lt.s32.totalorder %s23, 1
      %s273 = scalar_select %p272, %s23, 1
      %p274 = scmp.lt.s32.totalorder %s271, 1
      %s275 = scalar_select %p274, %s271, 1
      %s276 = smul.addr %s273, 2
      %s277 = sadd.s32 %s275, %s276
      %s278 = scalar_lea.vmem %s1, %s277
      %p279 = pneg %p91
      %p280 = pneg %p88
      %p281 = pneg %p119
      %p282 = pneg %p116
      %p283 = scmp.lt.s32.totalorder %s22, 0
      %s284 = scalar_select %p283, %s22, 0
      %p285 = scmp.lt.s32.totalorder %s23, 1
      %s286 = scalar_select %p285, %s23, 1
      %s287 = smul.addr %s284, 2
      %s288 = sadd.s32 %s286, %s287
      %s289 = smul.addr %s288, 8
      %s290 = scalar_lea.vmem %s2, %s289
      %p291 = pneg %p147
      %p292 = pneg %p144
      %p293 = scmp.lt.s32.totalorder %s22, 0
      %s294 = scalar_select %p293, %s22, 0
      %p295 = scmp.lt.s32.totalorder %s23, 1
      %s296 = scalar_select %p295, %s23, 1
      %s297 = smul.addr %s294, 2
      %s298 = sadd.s32 %s296, %s297
      %s299 = smul.addr %s298, 8
      %s300 = scalar_lea.vmem %s3, %s299
      %p301 = pneg %p175
      %p302 = pneg %p172
      %p303 = scmp.lt.s32.totalorder %s22, 0
      %s304 = scalar_select %p303, %s22, 0
      %p305 = scmp.lt.s32.totalorder %s23, 1
      %s306 = scalar_select %p305, %s23, 1
      %s307 = smul.addr %s304, 2
      %s308 = sadd.s32 %s306, %s307
      %s309 = scalar_lea.vmem %s4, %s308
      %p310 = pneg %p203
      %p311 = pneg %p200
      %p312 = scmp.lt.s32.totalorder %s22, 0
      %s313 = scalar_select %p312, %s22, 0
      %p314 = scmp.lt.s32.totalorder %s23, 1
      %s315 = scalar_select %p314, %s23, 1
      %s316 = smul.addr %s313, 2
      %s317 = sadd.s32 %s315, %s316
      %s318 = scalar_lea.vmem %s5, %s317
      %s319 = sadd.s32 %s22, %s24
      %s320 = smul.u32 2, %s319
      %p321 = scmp.lt.s32.totalorder %s23, 1
      %s322 = scalar_select %p321, %s23, 1
      %p323 = scmp.lt.s32.totalorder %s320, 1
      %s324 = scalar_select %p323, %s320, 1
      %s325 = smul.addr %s322, 2
      %s326 = sadd.s32 %s324, %s325
      %s327 = smul.addr %s326, 8
      %s328 = scalar_lea.vmem %s0, %s327
      %s329 = sadd.s32 %s22, %s24
      %s330 = smul.u32 2, %s329
      %s331 = sadd.s32 %s22, %s24
      %s332 = smul.u32 2, %s331
      %p333 = scmp.lt.s32.totalorder %s23, 1
      %s334 = scalar_select %p333, %s23, 1
      %p335 = scmp.lt.s32.totalorder %s332, 1
      %s336 = scalar_select %p335, %s332, 1
      %s337 = smul.addr %s334, 2
      %s338 = sadd.s32 %s336, %s337
      %s339 = scalar_lea.vmem %s1, %s338
      %s340 = sadd.s32 %s22, %s24
      %s341 = smul.u32 2, %s340
      %p342 = scmp.lt.s32.totalorder %s22, 0
      %s343 = scalar_select %p342, %s22, 0
      %p344 = scmp.lt.s32.totalorder %s23, 1
      %s345 = scalar_select %p344, %s23, 1
      %s346 = smul.addr %s343, 2
      %s347 = sadd.s32 %s345, %s346
      %s348 = smul.addr %s347, 8
      %s349 = scalar_lea.vmem %s2, %s348
      %p350 = scmp.lt.s32.totalorder %s22, 0
      %s351 = scalar_select %p350, %s22, 0
      %p352 = scmp.lt.s32.totalorder %s23, 1
      %s353 = scalar_select %p352, %s23, 1
      %s354 = smul.addr %s351, 2
      %s355 = sadd.s32 %s353, %s354
      %s356 = smul.addr %s355, 8
      %s357 = scalar_lea.vmem %s3, %s356
      %p358 = scmp.lt.s32.totalorder %s22, 0
      %s359 = scalar_select %p358, %s22, 0
      %p360 = scmp.lt.s32.totalorder %s23, 1
      %s361 = scalar_select %p360, %s23, 1
      %s362 = smul.addr %s359, 2
      %s363 = sadd.s32 %s361, %s362
      %s364 = scalar_lea.vmem %s4, %s363
      %p365 = scmp.lt.s32.totalorder %s22, 0
      %s366 = scalar_select %p365, %s22, 0
      %p367 = scmp.lt.s32.totalorder %s23, 1
      %s368 = scalar_select %p367, %s23, 1
      %s369 = smul.addr %s366, 2
      %s370 = sadd.s32 %s368, %s369
      %s371 = scalar_lea.vmem %s5, %s370
      %p372 = scmp.eq.s32.totalorder %s24, 0
      // Predicated region
      $region29: #{tpu_custom_call.1} parent=27 // pred_check
        %p373 = pneg %p372
      $region30: #{tpu_custom_call.1} parent=27 // pred_check_branch
        %375 = sbr.rel (%p373) target = $region32
      $region31: #{tpu_custom_call.1} parent=27 // pred_region
        %vm376 = vcmask 4096
        %377 = vst.msk [vmem:[%s349] sm:$0x1f] %vm376, 0.0
        %378 = vst.msk [vmem:[%s357] sm:$0x1f] %vm376, 0.0
        %vm379 = vcmask 0
        %380 = vst.msk [vmem:[%s364] sm:$0x1] %vm379, 0.0
        %381 = vst.msk [vmem:[%s371] sm:$0x1] %vm379, 0.0
      $region32: #{tpu_custom_call.1} parent=27 // pred_fallthru
        _
      %v382 = vld [vmem:[%s328] sm:$0x1f]
      %v383 = vld [vmem:[%s328 + $0x8] sm:$0x1f]
      %v384 = vld [vmem:[%s339] sm:$0x3]
      %v385 = vlaneseq
      %v386 = vshrl.u32 %v385, 7
      %v387 = vlaneseq
      %v388 = vshrl.u32 %v387, 7
      %v389 = vsub.s32 0, %v388
      %v390 = vrot.slane %v384, %v389
      %v391 = vlaneseq
      %v392 = vshrl.u32 %v391, 7
      %v393 = vsub.s32 1, %v392
      %v394 = vrot.slane %v384, %v393
      %vm395 = vcmp.eq.s32.totalorder %v386, %v390
      %vm396 = vcmp.eq.s32.totalorder %v386, %v394
      %vm397 = vcmask 1044480
      %v398 = vsel %vm397, %v382, -inf
      %v399 = vrot.slane %v398, 4
      %v400 = vmax.f32 %v398, %v399
      %v401 = vrot.slane %v400, 2
      %v402 = vmax.f32 %v400, %v401
      %v403 = vrot.slane %v402, 1
      %v404 = vmax.f32 %v402, %v403
      %v405 = vsel %vm397, %v383, -inf
      %v406 = vrot.slane %v405, 4
      %v407 = vmax.f32 %v405, %v406
      %v408 = vrot.slane %v407, 2
      %v409 = vmax.f32 %v407, %v408
      %v410 = vrot.slane %v409, 1
      %v411 = vmax.f32 %v409, %v410
      %v412 = vsub.f32 %v382, %v404
      %v413 = vsub.f32 %v383, %v411
      %v414 = vmul.f32 %v412, 1.442695
      %v415 = vpow.pop %v414
      %v416 = vmul.f32 %v413, 1.442695
      %v417 = vpow.pop %v416
      %v418 = vsel %vm397, %v415, 0.0
      %v419 = vrot.slane %v418, 4
      %v420 = vadd.f32 %v418, %v419
      %v421 = vrot.slane %v420, 2
      %v422 = vadd.f32 %v420, %v421
      %v423 = vrot.slane %v422, 1
      %v424 = vadd.f32 %v422, %v423
      %v425 = vsel %vm397, %v417, 0.0
      %v426 = vrot.slane %v425, 4
      %v427 = vadd.f32 %v425, %v426
      %v428 = vrot.slane %v427, 2
      %v429 = vadd.f32 %v427, %v428
      %v430 = vrot.slane %v429, 1
      %v431 = vadd.f32 %v429, %v430
      %v432 = vlog2.pop %v424
      %v433 = vmul.f32 %v432, 0.6931472
      %v434 = vlog2.pop %v431
      %v435 = vmul.f32 %v434, 0.6931472
      %v436 = vadd.f32 %v404, %v433
      %v437 = vadd.f32 %v411, %v435
      %v438 = vsel %vm395, %v382, 0.0
      %v439 = vsel %vm396, %v383, 0.0
      %v440 = vsel %vm397, %v438, 0.0
      %v441 = vrot.slane %v440, 4
      %v442 = vadd.f32 %v440, %v441
      %v443 = vrot.slane %v442, 2
      %v444 = vadd.f32 %v442, %v443
      %v445 = vrot.slane %v444, 1
      %v446 = vadd.f32 %v444, %v445
      %v447 = vsel %vm397, %v439, 0.0
      %v448 = vrot.slane %v447, 4
      %v449 = vadd.f32 %v447, %v448
      %v450 = vrot.slane %v449, 2
      %v451 = vadd.f32 %v449, %v450
      %v452 = vrot.slane %v451, 1
      %v453 = vadd.f32 %v451, %v452
      %v454 = vsub.f32 %v436, %v446
      %v455 = vsub.f32 %v437, %v453
      %v456 = vld [vmem:[%s371] sm:$0x1]
      %v457 = vadd.f32 %v454, %v455
      %458 = vadd.xlane.f32.xlu0 %v457
      %v459 = vpop.xlane.xlu0 %458
      %v460 = vadd.f32 %v456, %v459
      %vm461 = vcmask 0
      %462 = vst.msk [vmem:[%s371] sm:$0x1] %vm461, %v460
      %v463 = vrcp.pop %v424
      %v464 = vrcp.pop %v431
      %v465 = vmul.f32 %v415, %v463
      %v466 = vmul.f32 %v417, %v464
      %v467 = vld [vmem:[%s349] sm:$0x1f]
      %v468 = vsel %vm397, %v465, 0.0
      %v469 = vsel %vm397, %v466, 0.0
      %v470 = vadd.f32 %v468, %v469
      %471 = vadd.xlane.f32.xlu0 %v470
      %v472 = vpop.xlane.xlu0 %471
      %v473 = vadd.f32 %v467, %v472
      %vm474 = vcmask 4096
      %475 = vst.msk [vmem:[%s349] sm:$0x1f] %vm474, %v473
      %v476 = vsel %vm395, 1, 0
      %v477 = vsel %vm396, 1, 0
      %v478 = vcvt.s32.f32 %v476
      %v479 = vcvt.s32.f32 %v477
      %v480 = vsel %vm397, %v478, 0.0
      %v481 = vsel %vm397, %v479, 0.0
      %v482 = vadd.f32 %v480, %v481
      %483 = vadd.xlane.f32.xlu0 %v482
      %v484 = vpop.xlane.xlu0 %483
      %v485 = vld [vmem:[%s357] sm:$0x1f]
      %v486 = vadd.f32 %v485, %v484
      %487 = vst.msk [vmem:[%s357] sm:$0x1f] %vm474, %v486
      %v488 = vsub.s32 %v386, %v390
      %v489 = vsub.s32 %v386, %v394
      %v490 = vcvt.s32.f32 %v488
      %v491 = vcvt.s32.f32 %v489
      %v492 = vmul.f32 %v490, %v490
      %v493 = vmul.f32 %v491, %v491
      %v494 = vmul.f32 %v465, %v492
      %v495 = vmul.f32 %v466, %v493
      %v496 = vsel %vm397, %v494, 0.0
      %v497 = vrot.slane %v496, 4
      %v498 = vadd.f32 %v496, %v497
      %v499 = vrot.slane %v498, 2
      %v500 = vadd.f32 %v498, %v499
      %v501 = vrot.slane %v500, 1
      %v502 = vadd.f32 %v500, %v501
      %v503 = vsel %vm397, %v495, 0.0
      %v504 = vrot.slane %v503, 4
      %v505 = vadd.f32 %v503, %v504
      %v506 = vrot.slane %v505, 2
      %v507 = vadd.f32 %v505, %v506
      %v508 = vrot.slane %v507, 1
      %v509 = vadd.f32 %v507, %v508
      %v510 = vld [vmem:[%s364] sm:$0x1]
      %v511 = vadd.f32 %v502, %v509
      %512 = vadd.xlane.f32.xlu0 %v511
      %v513 = vpop.xlane.xlu0 %512
      %v514 = vadd.f32 %v510, %v513
      %515 = vst.msk [vmem:[%s364] sm:$0x1] %vm461, %v514
      %p516 = scmp.lt.s32.totalorder %s22, 0
      %s517 = scalar_select %p516, %s22, 0
      %p518 = scmp.lt.s32.totalorder %s23, 1
      %s519 = scalar_select %p518, %s23, 1
      %s520 = smul.addr %s517, 2
      %s521 = sadd.s32 %s519, %s520
      %s522 = smul.addr %s521, 8
      %s523 = scalar_lea.vmem %s2, %s522
      %p524 = scmp.lt.s32.totalorder %s22, 0
      %s525 = scalar_select %p524, %s22, 0
      %p526 = scmp.lt.s32.totalorder %s23, 1
      %s527 = scalar_select %p526, %s23, 1
      %s528 = smul.addr %s525, 2
      %s529 = sadd.s32 %s527, %s528
      %s530 = smul.addr %s529, 8
      %s531 = scalar_lea.vmem %s3, %s530
      %p532 = scmp.lt.s32.totalorder %s22, 0
      %s533 = scalar_select %p532, %s22, 0
      %p534 = scmp.lt.s32.totalorder %s23, 1
      %s535 = scalar_select %p534, %s23, 1
      %s536 = smul.addr %s533, 2
      %s537 = sadd.s32 %s535, %s536
      %s538 = scalar_lea.vmem %s4, %s537
      %p539 = scmp.lt.s32.totalorder %s22, 0
      %s540 = scalar_select %p539, %s22, 0
      %p541 = scmp.lt.s32.totalorder %s23, 1
      %s542 = scalar_select %p541, %s23, 1
      %s543 = smul.addr %s540, 2
      %s544 = sadd.s32 %s542, %s543
      %s545 = scalar_lea.vmem %s5, %s544
      // Predicated region
      $region33: #{tpu_custom_call.1} parent=27 // pred_check
        %p546 = pneg %p116
      $region34: #{tpu_custom_call.1} parent=27 // pred_check_branch
        %548 = sbr.rel (%p546) target = $region36
      $region35: #{tpu_custom_call.1} parent=27 // pred_region
        _
      $region36: #{tpu_custom_call.1} parent=27 // pred_fallthru
        _
      // Predicated region
      $region37: #{tpu_custom_call.1} parent=27 // pred_check
        %p549 = pneg %p144
      $region38: #{tpu_custom_call.1} parent=27 // pred_check_branch
        %551 = sbr.rel (%p549) target = $region40
      $region39: #{tpu_custom_call.1} parent=27 // pred_region
        _
      $region40: #{tpu_custom_call.1} parent=27 // pred_fallthru
        _
      // Predicated region
      $region41: #{tpu_custom_call.1} parent=27 // pred_check
        %p552 = pneg %p172
      $region42: #{tpu_custom_call.1} parent=27 // pred_check_branch
        %554 = sbr.rel (%p552) target = $region44
      $region43: #{tpu_custom_call.1} parent=27 // pred_region
        _
      $region44: #{tpu_custom_call.1} parent=27 // pred_fallthru
        _
      // Predicated region
      $region45: #{tpu_custom_call.1} parent=27 // pred_check
        %p555 = pneg %p200
      $region46: #{tpu_custom_call.1} parent=27 // pred_check_branch
        %557 = sbr.rel (%p555) target = $region48
      $region47: #{tpu_custom_call.1} parent=27 // pred_region
        _
      $region48: #{tpu_custom_call.1} parent=27 // pred_fallthru
        _
    $region28: #{tpu_custom_call.1} parent=5 // pred_fallthru
      _
    %p558 = scmp.le.s32.totalorder 2, %s12
    // Predicated region
    $region49: #{tpu_custom_call.1} parent=5 // pred_check
      %p559 = pneg %p558
    $region50: #{tpu_custom_call.1} parent=5 // pred_check_branch
      %561 = sbr.rel (%p559) target = $region52
    $region51: #{tpu_custom_call.1} parent=5 // pred_region
      %s562 = ssub.s32 %s12, 2
      // Predicated region
      $region53: #{tpu_custom_call.1} parent=51 // pred_check
        %p563 = pneg %p122
      $region54: #{tpu_custom_call.1} parent=51 // pred_check_branch
        %565 = sbr.rel (%p563) target = $region56
      $region55: #{tpu_custom_call.1} parent=51 // pred_region
        %p566 = scmp.lt.s32.totalorder %s25, 0
        %s567 = scalar_select %p566, %s25, 0
        %p568 = scmp.lt.s32.totalorder %s26, 1
        %s569 = scalar_select %p568, %s26, 1
        %s570 = smul.addr %s567, 2
        %s571 = sadd.s32 %s569, %s570
        %s572 = smul.addr %s571, 8
        %s573 = scalar_lea.vmem %s2, %s572
      $region56: #{tpu_custom_call.1} parent=51 // pred_fallthru
        _
      // Predicated region
      $region57: #{tpu_custom_call.1} parent=51 // pred_check
        %p574 = pneg %p150
      $region58: #{tpu_custom_call.1} parent=51 // pred_check_branch
        %576 = sbr.rel (%p574) target = $region60
      $region59: #{tpu_custom_call.1} parent=51 // pred_region
        %p577 = scmp.lt.s32.totalorder %s25, 0
        %s578 = scalar_select %p577, %s25, 0
        %p579 = scmp.lt.s32.totalorder %s26, 1
        %s580 = scalar_select %p579, %s26, 1
        %s581 = smul.addr %s578, 2
        %s582 = sadd.s32 %s580, %s581
        %s583 = smul.addr %s582, 8
        %s584 = scalar_lea.vmem %s3, %s583
      $region60: #{tpu_custom_call.1} parent=51 // pred_fallthru
        _
      // Predicated region
      $region61: #{tpu_custom_call.1} parent=51 // pred_check
        %p585 = pneg %p178
      $region62: #{tpu_custom_call.1} parent=51 // pred_check_branch
        %587 = sbr.rel (%p585) target = $region64
      $region63: #{tpu_custom_call.1} parent=51 // pred_region
        %p588 = scmp.lt.s32.totalorder %s25, 0
        %s589 = scalar_select %p588, %s25, 0
        %p590 = scmp.lt.s32.totalorder %s26, 1
        %s591 = scalar_select %p590, %s26, 1
        %s592 = smul.addr %s589, 2
        %s593 = sadd.s32 %s591, %s592
        %s594 = scalar_lea.vmem %s4, %s593
      $region64: #{tpu_custom_call.1} parent=51 // pred_fallthru
        _
      // Predicated region
      $region65: #{tpu_custom_call.1} parent=51 // pred_check
        %p595 = pneg %p206
      $region66: #{tpu_custom_call.1} parent=51 // pred_check_branch
        %597 = sbr.rel (%p595) target = $region68
      $region67: #{tpu_custom_call.1} parent=51 // pred_region
        %p598 = scmp.lt.s32.totalorder %s25, 0
        %s599 = scalar_select %p598, %s25, 0
        %p600 = scmp.lt.s32.totalorder %s26, 1
        %s601 = scalar_select %p600, %s26, 1
        %s602 = smul.addr %s599, 2
        %s603 = sadd.s32 %s601, %s602
        %s604 = scalar_lea.vmem %s5, %s603
      $region68: #{tpu_custom_call.1} parent=51 // pred_fallthru
        _
    $region52: #{tpu_custom_call.1} parent=5 // pred_fallthru
      _
  $region6: #{tpu_custom_call.1} parent=0 // loop_footer
    %s16 = sadd.s32 1, %s12
  $region7: #{tpu_custom_call.1} parent=0 // loop_footer_branch
    %11 = sbr.rel target = $region3
  $region8: #{tpu_custom_call.1} parent=0 // loop_exit
    _

</llo_original>
